<compile_context>
chip_gen: v6e
topology: v6e:2x2x1
jax: 0.10.0
libtpu: 0.0.40
codegen_flags: <defaults>
</compile_context>

<pallas_src>
import jax
import jax.numpy as jnp
from jax.experimental import pallas as pl
from jax.experimental.pallas import tpu as pltpu


# ----------------------------- helpers --------------------------------------

def _round_up(x: int, m: int) -> int:
    return (x + m - 1) // m * m


def _compute_dtype(dtype):
    dtype = jnp.dtype(dtype)
    if dtype == jnp.bfloat16:
        return jnp.bfloat16
    # fp16 is not MXU-native on TPU; ints/bool accumulate in f32.
    return jnp.float32


def _result_dtype(dtype):
    dtype = jnp.dtype(dtype)
    if dtype == jnp.bool_:
        return jnp.dtype(jnp.int32)
    return dtype


def _tl_cap(cdtype) -> int:
    """MXU contraction-width cap (multiple of 128/256)."""
    cap = 256
    try:
        kind = jax.devices()[0].device_kind.lower()
        # v5e's MXU is bf16/int native; f32 goes through a multi-pass
        # decomposition, so keep the contraction narrower there for f32.
        if ("v5 lite" in kind or "v5e" in kind) and jnp.dtype(cdtype) == jnp.float32:
            cap = 128
    except Exception:
        pass
    return cap


_TR_TARGET = 512       # lane-path row tile (v6e/v7x friendly, fits v5e VMEM too)
_TINY_L = 8            # scan lengths at/below this: XLA native cumsum
_TINY_SIZE = 1024      # total elements at/below this: XLA native cumsum
_SUBLANE_TARGET_ELEMS = 128 * 1024   # ~512 KiB f32 per sublane input block


# ----------------------------- kernels --------------------------------------

def _cumsum_lane_kernel(x_ref, o_ref, mask_ref, carry_ref):
    """Cumsum along the last (lane) axis of a (TR, TL) tile.

    y = x @ U + carry ; carry = running row prefix across L blocks.
    The mask lives in a single VMEM scratch (no double-buffered HBM input);
    it is (re)built only at the first L block of each row block.
    """
    j = pl.program_id(1)                      # innermost (arbitrary) L axis

    @pl.when(j == 0)
    def _():
        # Upper-triangular ones: M[k, n] = 1 iff k <= n (prefix along lanes).
        row = jax.lax.broadcasted_iota(jnp.int32, mask_ref.shape, 0)
        col = jax.lax.broadcasted_iota(jnp.int32, mask_ref.shape, 1)
        mask_ref[...] = (row <= col).astype(mask_ref.dtype)
        carry_ref[...] = jnp.zeros_like(carry_ref)

    y = jnp.dot(x_ref[...], mask_ref[...], preferred_element_type=jnp.float32)
    y = y + carry_ref[...]                    # (TR, TL) + (TR, 1)
    carry_ref[...] = y[:, -1:]                # full prefix incl. this block
    o_ref[...] = y.astype(o_ref.dtype)


def _cumsum_sublane_kernel(x_ref, o_ref, mask_ref, carry_ref):
    """Cumsum along the sublane axis of a (Bp, TL, TP) tile.

    y = Ltri @ x + carry, unrolled over the Bp batched `pre` slices.
    """
    j = pl.program_id(2)                      # innermost (arbitrary) L axis

    @pl.when(j == 0)
    def _():
        # Lower-triangular ones: M[i, k] = 1 iff k <= i (prefix along sublanes).
        row = jax.lax.broadcasted_iota(jnp.int32, mask_ref.shape, 0)
        col = jax.lax.broadcasted_iota(jnp.int32, mask_ref.shape, 1)
        mask_ref[...] = (row >= col).astype(mask_ref.dtype)
        carry_ref[...] = jnp.zeros_like(carry_ref)

    m = mask_ref[...]
    for b in range(x_ref.shape[0]):           # static unroll over pre batch
        y = jnp.dot(m, x_ref[b], preferred_element_type=jnp.float32)
        y = y + carry_ref[b]                  # (TL, TP) + (1, TP)
        carry_ref[b] = y[-1:, :]
        o_ref[b] = y.astype(o_ref.dtype)


# ----------------------------- wrappers --------------------------------------

def _cumsum_lane(x2d: jax.Array) -> jax.Array:
    """Cumsum along the last axis of a 2-D array (rows, L)."""
    R, L = x2d.shape
    cdtype = _compute_dtype(x2d.dtype)
    out_dtype = _result_dtype(x2d.dtype)
    xc = x2d.astype(cdtype)

    # Scan-axis (L) tiling: cap TL so FLOPs/elem stay bounded; carry handles L.
    cap = _tl_cap(cdtype)
    if L <= cap:
        TL, Lp = L, L
    else:
        TL = cap
        Lp = _round_up(L, TL)

    # Row tiling; keep >= 2 row blocks when possible so both v7x cores work.
    Rp0 = _round_up(R, 8)
    if Rp0 >= 2 * _TR_TARGET:
        TR = _TR_TARGET
    elif Rp0 >= 16:
        TR = min(_TR_TARGET, _round_up((Rp0 + 1) // 2, 8))
    else:
        TR = Rp0
    Rp = _round_up(R, TR)

    if (Rp, Lp) != (R, L):
        xc = jnp.pad(xc, ((0, Rp - R), (0, Lp - L)))

    isz = jnp.dtype(cdtype).itemsize
    osz = jnp.dtype(out_dtype).itemsize
    cost = pl.CostEstimate(
        flops=2 * Rp * Lp * TL,
        transcendentals=0,
        bytes_accessed=Rp * Lp * (isz + osz),
    )
    need = 2 * TR * TL * isz + 2 * TR * TL * osz + TL * TL * isz + TR * 4
    vmem_limit = int(min(max(need + (8 << 20), 16 << 20), 48 << 20))

    out = pl.pallas_call(
        _cumsum_lane_kernel,
        out_shape=jax.ShapeDtypeStruct((Rp, Lp), out_dtype),
        grid_spec=pltpu.PrefetchScalarGridSpec(
            num_scalar_prefetch=0,
            grid=(Rp // TR, Lp // TL),
            in_specs=[pl.BlockSpec((TR, TL), lambda i, j: (i, j))],
            out_specs=pl.BlockSpec((TR, TL), lambda i, j: (i, j)),
            scratch_shapes=[
                pltpu.VMEM((TL, TL), cdtype),        # triangular mask (single)
                pltpu.VMEM((TR, 1), jnp.float32),    # running carry
            ],
        ),
        compiler_params=pltpu.CompilerParams(
            dimension_semantics=("parallel", "arbitrary"),
            vmem_limit_bytes=vmem_limit),
        cost_estimate=cost,
    )(xc)

    if (Rp, Lp) != (R, L):
        out = out[:R, :L]
    return out


def _cumsum_sublane(x3d: jax.Array) -> jax.Array:
    """Cumsum along the middle axis of a 3-D array (pre, L, post), post >= 128."""
    P, L, Q = x3d.shape
    cdtype = _compute_dtype(x3d.dtype)
    out_dtype = _result_dtype(x3d.dtype)
    xc = x3d.astype(cdtype)

    # Scan-axis (L, sublanes) tiling.
    cap = _tl_cap(cdtype)
    if L <= cap:
        TL, Lp = L, L
    else:
        TL = cap
        Lp = _round_up(L, TL)

    # Post-axis (lanes) tiling.
    if Q <= 512:
        TP, Qp = Q, Q
    else:
        TP = None
        for cand in (512, 256, 128):
            if Q % cand == 0:
                TP, Qp = cand, Q
                break
        if TP is None:
            TP = 512
            Qp = _round_up(Q, TP)

    # Batch several `pre` slices per block so each DMA / matmul is large enough
    # to amortize the ~0.35 us per grid step.
    Bp = max(1, min(P, _SUBLANE_TARGET_ELEMS // max(1, TL * TP)))
    Bp = min(Bp, 8)
    # Keep >= 2 parallel blocks when possible (v7x has 2 TensorCores).
    if -(-P // Bp) * (Qp // TP) < 2:
        if Bp >= 2:
            Bp = max(1, Bp // 2)
        elif TP >= 256 and TP % 256 == 0 and Qp % (TP // 2) == 0:
            TP //= 2
    Pp = _round_up(P, Bp)

    if (Pp, Lp, Qp) != (P, L, Q):
        xc = jnp.pad(xc, ((0, Pp - P), (0, Lp - L), (0, Qp - Q)))

    isz = jnp.dtype(cdtype).itemsize
    osz = jnp.dtype(out_dtype).itemsize
    cost = pl.CostEstimate(
        flops=2 * Pp * Lp * Qp * TL,
        transcendentals=0,
        bytes_accessed=Pp * Lp * Qp * (isz + osz),
    )
    blk = Bp * TL * TP
    need = 2 * blk * isz + 2 * blk * osz + TL * TL * isz + Bp * TP * 4
    vmem_limit = int(min(max(need + (8 << 20), 16 << 20), 48 << 20))

    out = pl.pallas_call(
        _cumsum_sublane_kernel,
        out_shape=jax.ShapeDtypeStruct((Pp, Lp, Qp), out_dtype),
        grid_spec=pltpu.PrefetchScalarGridSpec(
            num_scalar_prefetch=0,
            grid=(Pp // Bp, Qp // TP, Lp // TL),
            in_specs=[pl.BlockSpec((Bp, TL, TP), lambda p, q, j: (p, j, q))],
            out_specs=pl.BlockSpec((Bp, TL, TP), lambda p, q, j: (p, j, q)),
            scratch_shapes=[
                pltpu.VMEM((TL, TL), cdtype),            # triangular mask
                pltpu.VMEM((Bp, 1, TP), jnp.float32),    # per-batch carry
            ],
        ),
        compiler_params=pltpu.CompilerParams(
            dimension_semantics=("parallel", "parallel", "arbitrary"),
            vmem_limit_bytes=vmem_limit),
        cost_estimate=cost,
    )(xc)

    if (Pp, Lp, Qp) != (P, L, Q):
        out = out[:P, :L, :Q]
    return out


def model_forward(x: jax.Array, dim: int) -> jax.Array:
    """JAX/Pallas equivalent of torch.cumsum(x, dim)."""
    if x.ndim == 0:
        return jnp.cumsum(x)
    ndim = x.ndim
    dim = dim % ndim                              # accept negative dims
    L = x.shape[dim]

    # Tiny scans / tiny tensors: pallas_call launch + per-step overhead would
    # dominate and the MXU tile is mostly idle -> use XLA's native cumsum.
    if x.size == 0 or L <= _TINY_L or x.size <= _TINY_SIZE:
        return jnp.cumsum(x, axis=dim)

    if dim == ndim - 1:
        rows = x.size // L
        return _cumsum_lane(x.reshape(rows, L)).reshape(x.shape)

    post = 1
    for s in x.shape[dim + 1:]:
        post *= s

    if post < 128:
        # Small post dim: sublane-path output would be lane-sparse (masked
        # stores, MXU N dim mostly idle). moveaxis + lane-dense scan wins.
        xm = jnp.moveaxis(x, dim, -1)
        rows = x.size // L
        ym = _cumsum_lane(xm.reshape(rows, L)).reshape(xm.shape)
        return jnp.moveaxis(ym, -1, dim)

    pre = 1
    for s in x.shape[:dim]:
        pre *= s
    return _cumsum_sublane(x.reshape(pre, L, post)).reshape(x.shape)


# ----------------------------- self-test --------------------------------------

if __name__ == "__main__":
    key = jax.random.PRNGKey(0)
    failures = []

    def check(name, out, ref, atol, rtol=1e-2):
        out = jax.block_until_ready(out)
        good = bool(jnp.allclose(out.astype(jnp.float32),
                                 ref.astype(jnp.float32),
                                 atol=atol, rtol=rtol))
        if not good:
            failures.append(name)
            print(f"MISMATCH: {name}")

    # Main case from the original test: (2, 4, 16, 16), every dim.
    # (dims 0/1 use the tiny-L XLA fallback; dims 2/3/-1 exercise Pallas.)
    x = jax.random.normal(key, (2, 4, 16, 16), dtype=jnp.float32)
    for dim in (0, 1, 2, 3, -1):
        check(f"f32 (2,4,16,16) dim={dim}",
              model_forward(x, dim), jnp.cumsum(x, axis=dim % x.ndim),
              atol=5e-2)

    k1, k2, k3, k4 = jax.random.split(key, 4)

    # Blocked lane scan (L > TL cap) with running carry.
    xl = jax.random.normal(k1, (64, 1536), dtype=jnp.float32)
    check("f32 lane blocked", model_forward(xl, -1),
          jnp.cumsum(xl, axis=-1), atol=0.3)

    # Blocked sublane scan (dim != last, lane-dense post axis, pre batching).
    xs = jax.random.normal(k2, (4, 640, 256), dtype=jnp.float32)
    check("f32 sublane blocked", model_forward(xs, 1),
          jnp.cumsum(xs, axis=1), atol=0.25)

    # Small post dim -> moveaxis + lane-dense scan.
    xm = jax.random.normal(k3, (2, 300, 64), dtype=jnp.float32)
    check("f32 small-post", model_forward(xm, 1),
          jnp.cumsum(xm, axis=1), atol=0.15)

    # bf16 input (MXU-native), f32 accumulation in-kernel.
    xb = jax.random.normal(k4, (8, 512), dtype=jnp.bfloat16)
    check("bf16 lane", model_forward(xb, -1),
          jnp.cumsum(xb.astype(jnp.float32), axis=-1), atol=0.3, rtol=0.05)

    # int32 input with small values (exact in f32 accumulation).
    xi = jax.random.randint(key, (32, 300), -8, 8, dtype=jnp.int32)
    oi = jax.block_until_ready(model_forward(xi, -1))
    if not (oi.dtype == jnp.int32
            and bool(jnp.array_equal(oi, jnp.cumsum(xi, axis=-1)))):
        failures.append("int32 lane")
        print("MISMATCH: int32 lane")

    if not failures:
        print("KERNEL_OK")
</pallas_src>

<mosaic_0001>
module attributes {stable_mosaic.version = 11 : i64} {
  func.func @_cumsum_lane_kernel(%arg0: i32, %arg1: i32, %arg2: memref<64x16xf32, #tpu.memory_space<vmem>>, %arg3: memref<64x16xf32, #tpu.memory_space<vmem>>, %arg4: memref<16x16xf32, #tpu.memory_space<vmem>>, %arg5: memref<64x1xf32, #tpu.memory_space<vmem>>) attributes {dimension_semantics = [#tpu.dimension_semantics<parallel>, #tpu.dimension_semantics<arbitrary>], iteration_bounds = array<i64: 2, 1>, scalar_prefetch = 0 : i64, scratch_operands = 2 : i64, tpu.core_type = #tpu.core_type<tc>, window_params = [{transform_indices = @transform_0, window_bounds = array<i64: 64, 16>}, {transform_indices = @transform_1, window_bounds = array<i64: 64, 16>}]} {
    %c0_i32 = arith.constant 0 : i32
    %0 = arith.cmpi eq, %arg1, %c0_i32 : i32
    %1 = arith.extui %0 : i1 to i32
    %c0_i32_0 = arith.constant 0 : i32
    %2 = arith.cmpi ne, %1, %c0_i32_0 : i32
    scf.if %2 {
      %12 = tpu.iota {dimensions = array<i32: 0>} : vector<16x16xi32>
      %13 = tpu.iota {dimensions = array<i32: 1>} : vector<16x16xi32>
      %14 = arith.cmpi sle, %12, %13 : vector<16x16xi32>
      %15 = arith.extui %14 : vector<16x16xi1> to vector<16x16xi32>
      %16 = arith.sitofp %15 : vector<16x16xi32> to vector<16x16xf32>
      %c0_10 = arith.constant 0 : index
      %c0_11 = arith.constant 0 : index
      %17 = vector.load %arg4[%c0_10, %c0_11] : memref<16x16xf32, #tpu.memory_space<vmem>>, vector<16x16xf32>
      tpu.vector_store %arg4[%c0_10, %c0_11], %16 {strides = array<i32>} : memref<16x16xf32, #tpu.memory_space<vmem>>, vector<16x16xf32>,
      %cst_12 = arith.constant 0.000000e+00 : f32
      %18 = vector.broadcast %cst_12 : f32 to vector<64x1xf32>
      %c0_13 = arith.constant 0 : index
      %c0_14 = arith.constant 0 : index
      %19 = vector.load %arg5[%c0_13, %c0_14] : memref<64x1xf32, #tpu.memory_space<vmem>>, vector<64x1xf32>
      tpu.vector_store %arg5[%c0_13, %c0_14], %18 {strides = array<i32>} : memref<64x1xf32, #tpu.memory_space<vmem>>, vector<64x1xf32>,
    } else {
    }
    %c0 = arith.constant 0 : index
    %c0_1 = arith.constant 0 : index
    %3 = vector.load %arg2[%c0, %c0_1] : memref<64x16xf32, #tpu.memory_space<vmem>>, vector<64x16xf32>
    %c0_2 = arith.constant 0 : index
    %c0_3 = arith.constant 0 : index
    %4 = vector.load %arg4[%c0_2, %c0_3] : memref<16x16xf32, #tpu.memory_space<vmem>>, vector<16x16xf32>
    %cst = arith.constant dense<0.000000e+00> : vector<64x16xf32>
    %5 = tpu.matmul %3, %4, %cst {dimension_numbers = #tpu.dot_dimension_numbers<[1], [0], [0], [1], [0, 0, 1, 1], [], []>} : vector<64x16xf32>, vector<16x16xf32>, vector<64x16xf32> -> vector<64x16xf32>
    %c0_4 = arith.constant 0 : index
    %c0_5 = arith.constant 0 : index
    %6 = vector.load %arg5[%c0_4, %c0_5] : memref<64x1xf32, #tpu.memory_space<vmem>>, vector<64x1xf32>
    %7 = vector.broadcast %6 : vector<64x1xf32> to vector<64x16xf32>
    %8 = arith.addf %5, %7 : vector<64x16xf32>
    %9 = vector.extract_strided_slice %8 {offsets = [0, 15], sizes = [64, 1], strides = [1, 1]} : vector<64x16xf32> to vector<64x1xf32>
    %c0_6 = arith.constant 0 : index
    %c0_7 = arith.constant 0 : index
    %10 = vector.load %arg5[%c0_6, %c0_7] : memref<64x1xf32, #tpu.memory_space<vmem>>, vector<64x1xf32>
    tpu.vector_store %arg5[%c0_6, %c0_7], %9 {strides = array<i32>} : memref<64x1xf32, #tpu.memory_space<vmem>>, vector<64x1xf32>,
    %c0_8 = arith.constant 0 : index
    %c0_9 = arith.constant 0 : index
    %11 = vector.load %arg3[%c0_8, %c0_9] : memref<64x16xf32, #tpu.memory_space<vmem>>, vector<64x16xf32>
    tpu.vector_store %arg3[%c0_8, %c0_9], %8 {strides = array<i32>} : memref<64x16xf32, #tpu.memory_space<vmem>>, vector<64x16xf32>,
    return
  }
  func.func @transform_0(%arg0: i32, %arg1: i32) -> (i32, i32) {
    %c0_i32 = arith.constant 0 : i32
    return %arg0, %arg1 : i32, i32
  }
  func.func @transform_1(%arg0: i32, %arg1: i32) -> (i32, i32) {
    %c0_i32 = arith.constant 0 : i32
    return %arg0, %arg1 : i32, i32
  }
}

</mosaic_0001>

<llo_original>
// kernel: tpu_custom_call.1
$region0: #{tpu_custom_call.1}
  #allocation0 [shape = 'u32[]', space=smem, size = 0x4, offset = 0x4, fixed_abs, tag = 'smem constant byte address 0x4 - core index']
  #allocation1 [shape = 'u32[144,128]{1,0:T(1,128)}', space=vmem, size = 0x12000, scoped, tag = 'internal scratch']
  #allocation2 [shape = 'f32[16,16]{1,0:T(8,128)}', space=vmem, size = 0x2000, scoped, tag = 'scratch operand']
  #allocation3 [shape = 'f32[64,1]{1,0:T(8,128)}', space=vmem, size = 0x8000, scoped, tag = 'scratch operand']
  %s0 = inlined_call_operand.vmem [shape: f32[128,16], index: 0, kind: input, shape index: {}]
  %s1 = inlined_call_operand.vmem [shape: f32[128,16], index: 1, kind: output, shape index: {}]
  %s2 = sld [smem:[#allocation0]]
  $region41: #{tpu_custom_call.1} parent=0
    _
  %s4 = ssub.s32 1, %s2
  %s5 = scalar_select 0, %s4, %s2
  loop: start=0, step=1, limit=4
  $region2: #{tpu_custom_call.1} parent=0 // loop_pre_header
    _
  $region3: #{tpu_custom_call.1} parent=0 // loop_header
    %s7 = sphi 0, %s11
    %p8 = scmp.ge.s32.totalorder %s7, 4
    %s14 = sphi 0, %s26
    %s15 = sphi 0, %s22
    %s16 = sphi 0, %s14
    %s17 = sphi 0, %s15
    %s18 = sphi 0, %s16
    %s19 = sphi 0, %s17
    %s31 = sphi 0, %s33
    %s34 = sphi 0, %s31
    %s35 = sphi 0, %s34
    %s51 = sphi 0, %s35
    %s59 = sphi 0, %s61
    %s62 = sphi 0, %s59
    %s63 = sphi 0, %s62
    %s79 = sphi 0, %s63
  $region4: #{tpu_custom_call.1} parent=0 // loop_header_branch
    %10 = sbr.rel (%p8) target = $region8
  $region5: #{tpu_custom_call.1} parent=0 // loop_body
    %s12 = ssub.s32 %s7, 1
    %s13 = ssub.s32 %s7, 2
    %s20 = sadd.s32 1, %s15
    %p21 = scmp.ge.s32.totalorder %s20, 1
    %s22 = scalar_select %p21, 0, %s20
    %s23 = sadd.s32 1, %s14
    %s24 = scalar_select %p21, %s23, %s14
    %p25 = scmp.ge.s32.totalorder %s24, 2
    %s26 = scalar_select %p25, 0, %s24
    %s27 = ssub.s32 %s14, %s26
    %s28 = ssub.s32 %s15, %s22
    %s29 = sor.u32 %s27, %s28
    %p30 = scmp.eq.s32.totalorder %s29, 0
    %s32 = sadd.s32 %s31, 1
    %s33 = scalar_select %p30, %s31, %s32
    %p36 = pneg %p30
    %p37 = scmp.eq.s32.totalorder %s7, 1
    %p38 = por %p36, %p37
    %p39 = scmp.ne.s32.totalorder %s31, %s34
    %p40 = scmp.eq.s32.totalorder %s7, 0
    %p41 = por %p39, %p40
    %p42 = scmp.ne.s32.totalorder %s31, %s34
    %p43 = scmp.eq.s32.totalorder %s12, 1
    %p44 = por %p42, %p43
    %p45 = scmp.ne.s32.totalorder %s34, %s35
    %p46 = scmp.eq.s32.totalorder %s12, 0
    %p47 = por %p45, %p46
    %p48 = scmp.ne.s32.totalorder %s34, %s35
    %p49 = scmp.eq.s32.totalorder %s13, 1
    %p50 = por %p48, %p49
    %p52 = scmp.ne.s32.totalorder %s35, %s51
    %p53 = scmp.eq.s32.totalorder %s13, 0
    %p54 = por %p52, %p53
    %s55 = ssub.s32 %s14, %s26
    %s56 = ssub.s32 %s15, %s22
    %s57 = sor.u32 %s55, %s56
    %p58 = scmp.eq.s32.totalorder %s57, 0
    %s60 = sadd.s32 %s59, 1
    %s61 = scalar_select %p58, %s59, %s60
    %p64 = pneg %p58
    %p65 = scmp.eq.s32.totalorder %s7, 1
    %p66 = por %p64, %p65
    %p67 = scmp.ne.s32.totalorder %s59, %s62
    %p68 = scmp.eq.s32.totalorder %s7, 0
    %p69 = por %p67, %p68
    %p70 = scmp.ne.s32.totalorder %s59, %s62
    %p71 = scmp.eq.s32.totalorder %s12, 1
    %p72 = por %p70, %p71
    %p73 = scmp.ne.s32.totalorder %s62, %s63
    %p74 = scmp.eq.s32.totalorder %s12, 0
    %p75 = por %p73, %p74
    %p76 = scmp.ne.s32.totalorder %s62, %s63
    %p77 = scmp.eq.s32.totalorder %s13, 1
    %p78 = por %p76, %p77
    %p80 = scmp.ne.s32.totalorder %s63, %s79
    %p81 = scmp.eq.s32.totalorder %s13, 0
    %p82 = por %p80, %p81
    %p83 = scmp.le.s32.totalorder 1, %s7
    %p84 = scmp.lt.s32.totalorder %s7, 3
    %p85 = pnand %p83, %p84
    %p86 = pneg %p85
    // Predicated region
    $region9: #{tpu_custom_call.1} parent=5 // pred_check
      _
    $region10: #{tpu_custom_call.1} parent=5 // pred_check_branch
      %88 = sbr.rel (%p85) target = $region12
    $region11: #{tpu_custom_call.1} parent=5 // pred_region
      %s89 = ssub.s32 %s7, 1
    $region12: #{tpu_custom_call.1} parent=5 // pred_fallthru
      _
    %p90 = scmp.lt.s32.totalorder %s7, 2
    // Predicated region
    $region13: #{tpu_custom_call.1} parent=5 // pred_check
      %p91 = pneg %p90
    $region14: #{tpu_custom_call.1} parent=5 // pred_check_branch
      %93 = sbr.rel (%p91) target = $region16
    $region15: #{tpu_custom_call.1} parent=5 // pred_region
      // Predicated region
      $region17: #{tpu_custom_call.1} parent=15 // pred_check
        %p94 = pneg %p41
      $region18: #{tpu_custom_call.1} parent=15 // pred_check_branch
        %96 = sbr.rel (%p94) target = $region20
      $region19: #{tpu_custom_call.1} parent=15 // pred_region
        %s97 = smul.u32 8, %s14
        %p98 = scmp.lt.s32.totalorder %s97, 15
        %s99 = scalar_select %p98, %s97, 15
        %p100 = scmp.lt.s32.totalorder %s15, 0
        %s101 = scalar_select %p100, %s15, 0
        %s102 = sadd.s32 %s101, %s99
        %s103 = smul.addr %s102, 8
        %s104 = scalar_lea.vmem %s0, %s103
        %s105 = smul.u32 8, %s14
      $region20: #{tpu_custom_call.1} parent=15 // pred_fallthru
        _
    $region16: #{tpu_custom_call.1} parent=5 // pred_fallthru
      _
    %p106 = scmp.le.s32.totalorder 1, %s7
    %p107 = scmp.lt.s32.totalorder %s7, 3
    %p108 = pnand %p106, %p107
    %p109 = pneg %p108
    // Predicated region
    $region21: #{tpu_custom_call.1} parent=5 // pred_check
      _
    $region22: #{tpu_custom_call.1} parent=5 // pred_check_branch
      %111 = sbr.rel (%p108) target = $region24
    $region23: #{tpu_custom_call.1} parent=5 // pred_region
      %s112 = ssub.s32 %s7, 1
      %s113 = smul.u32 8, %s16
      %p114 = scmp.lt.s32.totalorder %s113, 15
      %s115 = scalar_select %p114, %s113, 15
      %p116 = scmp.lt.s32.totalorder %s17, 0
      %s117 = scalar_select %p116, %s17, 0
      %s118 = sadd.s32 %s117, %s115
      %s119 = smul.addr %s118, 8
      %s120 = scalar_lea.vmem %s0, %s119
      %p121 = pneg %p47
      %p122 = pneg %p44
      %p123 = pneg %p75
      %p124 = pneg %p72
      %s125 = smul.u32 8, %s16
      %p126 = scmp.lt.s32.totalorder %s125, 15
      %s127 = scalar_select %p126, %s125, 15
      %p128 = scmp.lt.s32.totalorder %s17, 0
      %s129 = scalar_select %p128, %s17, 0
      %s130 = sadd.s32 %s129, %s127
      %s131 = smul.addr %s130, 8
      %s132 = scalar_lea.vmem %s1, %s131
      %s133 = smul.u32 8, %s16
      %p134 = scmp.lt.s32.totalorder %s133, 15
      %s135 = scalar_select %p134, %s133, 15
      %p136 = scmp.lt.s32.totalorder %s17, 0
      %s137 = scalar_select %p136, %s17, 0
      %s138 = sadd.s32 %s137, %s135
      %s139 = smul.addr %s138, 8
      %s140 = scalar_lea.vmem %s0, %s139
      %s141 = smul.u32 8, %s16
      %s142 = smul.u32 8, %s16
      %p143 = scmp.lt.s32.totalorder %s142, 15
      %s144 = scalar_select %p143, %s142, 15
      %p145 = scmp.lt.s32.totalorder %s17, 0
      %s146 = scalar_select %p145, %s17, 0
      %s147 = sadd.s32 %s146, %s144
      %s148 = smul.addr %s147, 8
      %s149 = scalar_lea.vmem %s1, %s148
      %s150 = smul.u32 8, %s16
      %p151 = scmp.eq.s32.totalorder %s17, 0
      // Predicated region
      $region25: #{tpu_custom_call.1} parent=23 // pred_check
        %p152 = pneg %p151
      $region26: #{tpu_custom_call.1} parent=23 // pred_check_branch
        %154 = sbr.rel (%p152) target = $region28
      $region27: #{tpu_custom_call.1} parent=23 // pred_region
        %v155 = vlaneseq
        %v156 = vshrl.u32 %v155, 7
        %v157 = vadd.s32 %v156, 8
        %v158 = vlaneseq
        %v159 = vand.u32 %v158, 127
        %vm160 = vcmp.le.s32.totalorder %v156, %v159
        %vm161 = vcmp.le.s32.totalorder %v157, %v159
        %v162 = vsel %vm160, 1, 0
        %v163 = vsel %vm161, 1, 0
        %v164 = vcvt.s32.f32 %v162
        %v165 = vcvt.s32.f32 %v163
        %vm166 = vcmask 130048
        %167 = vst.msk [vmem:[#allocation2] sm:$0xff] %vm166, %v164
        %168 = vst.msk [vmem:[#allocation2 + $0x8] sm:$0xff] %vm166, %v165
        %vm169 = vcmask 7168
        %170 = vst.msk [vmem:[#allocation3] sm:$0xff] %vm169, 0.0
        %171 = vst.msk [vmem:[#allocation3 + $0x8] sm:$0xff] %vm169, 0.0
        %172 = vst.msk [vmem:[#allocation3 + $0x10] sm:$0xff] %vm169, 0.0
        %173 = vst.msk [vmem:[#allocation3 + $0x18] sm:$0xff] %vm169, 0.0
        %174 = vst.msk [vmem:[#allocation3 + $0x20] sm:$0xff] %vm169, 0.0
        %175 = vst.msk [vmem:[#allocation3 + $0x28] sm:$0xff] %vm169, 0.0
        %176 = vst.msk [vmem:[#allocation3 + $0x30] sm:$0xff] %vm169, 0.0
        %177 = vst.msk [vmem:[#allocation3 + $0x38] sm:$0xff] %vm169, 0.0
      $region28: #{tpu_custom_call.1} parent=23 // pred_fallthru
        _
      %v178 = vld [vmem:[%s140] sm:$0xff]
      %v179 = vld [vmem:[%s140 + $0x8] sm:$0xff]
      %v180 = vld [vmem:[%s140 + $0x10] sm:$0xff]
      %v181 = vld [vmem:[%s140 + $0x18] sm:$0xff]
      %v182 = vld [vmem:[%s140 + $0x20] sm:$0xff]
      %v183 = vld [vmem:[%s140 + $0x28] sm:$0xff]
      %v184 = vld [vmem:[%s140 + $0x30] sm:$0xff]
      %v185 = vld [vmem:[%s140 + $0x38] sm:$0xff]
      %v186 = vld [vmem:[#allocation2] sm:$0xff]
      %v187 = vld [vmem:[#allocation2 + $0x8] sm:$0xff]
      %v188 = vld [vmem:[#allocation3] sm:$0xff]
      %v189 = vld [vmem:[#allocation3 + $0x8] sm:$0xff]
      %v190 = vld [vmem:[#allocation3 + $0x10] sm:$0xff]
      %v191 = vld [vmem:[#allocation3 + $0x18] sm:$0xff]
      %v192 = vld [vmem:[#allocation3 + $0x20] sm:$0xff]
      %v193 = vld [vmem:[#allocation3 + $0x28] sm:$0xff]
      %v194 = vld [vmem:[#allocation3 + $0x30] sm:$0xff]
      %v195 = vld [vmem:[#allocation3 + $0x38] sm:$0xff]
      %197 = vset.pattern.permute.xlu0 0
      %198 = vperm.xlu0 %197, %v188
      %v199 = vpop.permute.xlu0 %198
      %202 = vset.pattern.permute.xlu0 0
      %203 = vperm.xlu0 %202, %v189
      %v204 = vpop.permute.xlu0 %203
      %207 = vset.pattern.permute.xlu0 0
      %208 = vperm.xlu0 %207, %v190
      %v209 = vpop.permute.xlu0 %208
      %212 = vset.pattern.permute.xlu0 0
      %213 = vperm.xlu0 %212, %v191
      %v214 = vpop.permute.xlu0 %213
      %217 = vset.pattern.permute.xlu0 0
      %218 = vperm.xlu0 %217, %v192
      %v219 = vpop.permute.xlu0 %218
      %222 = vset.pattern.permute.xlu0 0
      %223 = vperm.xlu0 %222, %v193
      %v224 = vpop.permute.xlu0 %223
      %227 = vset.pattern.permute.xlu0 0
      %228 = vperm.xlu0 %227, %v194
      %v229 = vpop.permute.xlu0 %228
      %232 = vset.pattern.permute.xlu0 0
      %233 = vperm.xlu0 %232, %v195
      %v234 = vpop.permute.xlu0 %233
      %vm236 = vcmask 130048
      %v238 = vsel %vm236, %v178, 0
      %v241 = vsel %vm236, %v179, 0
      %v244 = vsel %vm236, %v180, 0
      %v247 = vsel %vm236, %v181, 0
      %v250 = vsel %vm236, %v182, 0
      %v253 = vsel %vm236, %v183, 0
      %v256 = vsel %vm236, %v184, 0
      %v259 = vsel %vm236, %v185, 0
      %261 = vmatprep.subr.mxu0 0.0
      %262 = vmatpush1.msra.mxu0 0.0
      %263 = vmatprep.subr.mxu0 0.0
      %264 = vmatpush1.msra.mxu0 0.0
      %265 = vmatprep.subr.mxu0 0.0
      %266 = vmatpush1.msra.mxu0 0.0
      %267 = vmatprep.subr.mxu0 0.0
      %268 = vmatpush1.msra.mxu0 0.0
      %269 = vmatprep.subr.mxu0 0.0
      %270 = vmatpush1.msra.mxu0 0.0
      %271 = vmatprep.subr.mxu0 0.0
      %272 = vmatpush1.msra.mxu0 0.0
      %273 = vmatprep.subr.mxu0 0.0
      %274 = vmatpush1.msra.mxu0 0.0
      %275 = vmatprep.subr.mxu0 0.0
      %276 = vmatpush1.msra.mxu0 0.0
      %277 = vmatprep.subr.mxu0 0.0
      %278 = vmatpush1.msra.mxu0 0.0
      %279 = vmatprep.subr.mxu0 0.0
      %280 = vmatpush1.msra.mxu0 0.0
      %281 = vmatprep.subr.mxu0 0.0
      %282 = vmatpush1.msra.mxu0 0.0
      %283 = vmatprep.subr.mxu0 0.0
      %284 = vmatpush1.msra.mxu0 0.0
      %285 = vmatprep.subr.mxu0 0.0
      %286 = vmatpush1.msra.mxu0 0.0
      %287 = vmatprep.subr.mxu0 0.0
      %288 = vmatpush1.msra.mxu0 0.0
      %289 = vmatprep.subr.mxu0 0.0
      %290 = vmatpush1.msra.mxu0 %v187
      %291 = vmatprep.subr.mxu0 0.0
      %292 = vmatpush1.msra.mxu0 %v186
      %293 = vmatprep.subr.mxu0 0.0
      %294 = vmatpush2.msra.mxu0 0.0
      %295 = vmatprep.subr.mxu0 0.0
      %296 = vmatpush2.msra.mxu0 0.0
      %297 = vmatprep.subr.mxu0 0.0
      %298 = vmatpush2.msra.mxu0 0.0
      %299 = vmatprep.subr.mxu0 0.0
      %300 = vmatpush2.msra.mxu0 0.0
      %301 = vmatprep.subr.mxu0 0.0
      %302 = vmatpush2.msra.mxu0 0.0
      %303 = vmatprep.subr.mxu0 0.0
      %304 = vmatpush2.msra.mxu0 0.0
      %305 = vmatprep.subr.mxu0 0.0
      %306 = vmatpush2.msra.mxu0 0.0
      %307 = vmatprep.subr.mxu0 0.0
      %308 = vmatpush2.msra.mxu0 0.0
      %309 = vmatprep.subr.mxu0 0.0
      %310 = vmatpush2.msra.mxu0 0.0
      %311 = vmatprep.subr.mxu0 0.0
      %312 = vmatpush2.msra.mxu0 0.0
      %313 = vmatprep.subr.mxu0 0.0
      %314 = vmatpush2.msra.mxu0 0.0
      %315 = vmatprep.subr.mxu0 0.0
      %316 = vmatpush2.msra.mxu0 0.0
      %317 = vmatprep.subr.mxu0 0.0
      %318 = vmatpush2.msra.mxu0 0.0
      %319 = vmatprep.subr.mxu0 0.0
      %320 = vmatpush2.msra.mxu0 0.0
      %321 = vmatprep.subr.mxu0 0.0
      %322 = vmatpush2.msra.mxu0 0.0
      %323 = vmatprep.subr.mxu0 0.0
      %324 = vmatpush2.msra.mxu0 0.0
      %325 = vmatprep.mubr.f32.mxu0 0.0
      %326 = vmatmul.mubr.f32.gmra.mxu0 %v238
      %v327 = vpop.f32.mrf.mxu0
      %v328 = vadd.f32 %v199, %v327
      %v329 = vpop.f32.mrf.mxu0
      %330 = vmatprep.mubr.f32.mxu0 0.0
      %331 = vmatmul.mubr.f32.gmra.mxu0 %v241
      %v332 = vpop.f32.mrf.mxu0
      %v333 = vadd.f32 %v204, %v332
      %v334 = vpop.f32.mrf.mxu0
      %335 = vmatprep.mubr.f32.mxu0 0.0
      %336 = vmatmul.mubr.f32.gmra.mxu0 %v244
      %v337 = vpop.f32.mrf.mxu0
      %v338 = vadd.f32 %v209, %v337
      %v339 = vpop.f32.mrf.mxu0
      %340 = vmatprep.mubr.f32.mxu0 0.0
      %341 = vmatmul.mubr.f32.gmra.mxu0 %v247
      %v342 = vpop.f32.mrf.mxu0
      %v343 = vadd.f32 %v214, %v342
      %v344 = vpop.f32.mrf.mxu0
      %345 = vmatprep.mubr.f32.mxu0 0.0
      %346 = vmatmul.mubr.f32.gmra.mxu0 %v250
      %v347 = vpop.f32.mrf.mxu0
      %v348 = vadd.f32 %v219, %v347
      %v349 = vpop.f32.mrf.mxu0
      %350 = vmatprep.mubr.f32.mxu0 0.0
      %351 = vmatmul.mubr.f32.gmra.mxu0 %v253
      %v352 = vpop.f32.mrf.mxu0
      %v353 = vadd.f32 %v224, %v352
      %v354 = vpop.f32.mrf.mxu0
      %355 = vmatprep.mubr.f32.mxu0 0.0
      %356 = vmatmul.mubr.f32.gmra.mxu0 %v256
      %v357 = vpop.f32.mrf.mxu0
      %v358 = vadd.f32 %v229, %v357
      %v359 = vpop.f32.mrf.mxu0
      %360 = vmatprep.mubr.f32.mxu0 0.0
      %361 = vmatmul.mubr.f32.gmra.mxu0 %v259
      %v362 = vpop.f32.mrf.mxu0
      %v363 = vadd.f32 %v234, %v362
      %v364 = vpop.f32.mrf.mxu0
      %365 = vdwg.mxu0
      %374 = vrot.lane.b32.xlu0 %v328, 113
      %v375 = vpop.permute.xlu0 %374
      %376 = vrot.lane.b32.xlu0 %v333, 113
      %v377 = vpop.permute.xlu0 %376
      %378 = vrot.lane.b32.xlu0 %v338, 113
      %v379 = vpop.permute.xlu0 %378
      %380 = vrot.lane.b32.xlu0 %v343, 113
      %v381 = vpop.permute.xlu0 %380
      %382 = vrot.lane.b32.xlu0 %v348, 113
      %v383 = vpop.permute.xlu0 %382
      %384 = vrot.lane.b32.xlu0 %v353, 113
      %v385 = vpop.permute.xlu0 %384
      %386 = vrot.lane.b32.xlu0 %v358, 113
      %v387 = vpop.permute.xlu0 %386
      %388 = vrot.lane.b32.xlu0 %v363, 113
      %v389 = vpop.permute.xlu0 %388
      %vm398 = vcmask 7168
      %399 = vst.msk [vmem:[#allocation3] sm:$0xff] %vm398, %v375
      %400 = vst.msk [vmem:[#allocation3 + $0x8] sm:$0xff] %vm398, %v377
      %401 = vst.msk [vmem:[#allocation3 + $0x10] sm:$0xff] %vm398, %v379
      %402 = vst.msk [vmem:[#allocation3 + $0x18] sm:$0xff] %vm398, %v381
      %403 = vst.msk [vmem:[#allocation3 + $0x20] sm:$0xff] %vm398, %v383
      %404 = vst.msk [vmem:[#allocation3 + $0x28] sm:$0xff] %vm398, %v385
      %405 = vst.msk [vmem:[#allocation3 + $0x30] sm:$0xff] %vm398, %v387
      %406 = vst.msk [vmem:[#allocation3 + $0x38] sm:$0xff] %vm398, %v389
      %407 = vst.msk [vmem:[%s149] sm:$0xff] %vm236, %v328
      %408 = vst.msk [vmem:[%s149 + $0x8] sm:$0xff] %vm236, %v333
      %409 = vst.msk [vmem:[%s149 + $0x10] sm:$0xff] %vm236, %v338
      %410 = vst.msk [vmem:[%s149 + $0x18] sm:$0xff] %vm236, %v343
      %411 = vst.msk [vmem:[%s149 + $0x20] sm:$0xff] %vm236, %v348
      %412 = vst.msk [vmem:[%s149 + $0x28] sm:$0xff] %vm236, %v353
      %413 = vst.msk [vmem:[%s149 + $0x30] sm:$0xff] %vm236, %v358
      %414 = vst.msk [vmem:[%s149 + $0x38] sm:$0xff] %vm236, %v363
      %s415 = smul.u32 8, %s16
      %p416 = scmp.lt.s32.totalorder %s415, 15
      %s417 = scalar_select %p416, %s415, 15
      %p418 = scmp.lt.s32.totalorder %s17, 0
      %s419 = scalar_select %p418, %s17, 0
      %s420 = sadd.s32 %s419, %s417
      %s421 = smul.addr %s420, 8
      %s422 = scalar_lea.vmem %s1, %s421
      // Predicated region
      $region29: #{tpu_custom_call.1} parent=23 // pred_check
        %p423 = pneg %p72
      $region30: #{tpu_custom_call.1} parent=23 // pred_check_branch
        %425 = sbr.rel (%p423) target = $region32
      $region31: #{tpu_custom_call.1} parent=23 // pred_region
        %s426 = smul.u32 8, %s16
      $region32: #{tpu_custom_call.1} parent=23 // pred_fallthru
        _
    $region24: #{tpu_custom_call.1} parent=5 // pred_fallthru
      _
    %p427 = scmp.le.s32.totalorder 2, %s7
    // Predicated region
    $region33: #{tpu_custom_call.1} parent=5 // pred_check
      %p428 = pneg %p427
    $region34: #{tpu_custom_call.1} parent=5 // pred_check_branch
      %430 = sbr.rel (%p428) target = $region36
    $region35: #{tpu_custom_call.1} parent=5 // pred_region
      %s431 = ssub.s32 %s7, 2
      // Predicated region
      $region37: #{tpu_custom_call.1} parent=35 // pred_check
        %p432 = pneg %p78
      $region38: #{tpu_custom_call.1} parent=35 // pred_check_branch
        %434 = sbr.rel (%p432) target = $region40
      $region39: #{tpu_custom_call.1} parent=35 // pred_region
        %s435 = smul.u32 8, %s18
        %p436 = scmp.lt.s32.totalorder %s435, 15
        %s437 = scalar_select %p436, %s435, 15
        %p438 = scmp.lt.s32.totalorder %s19, 0
        %s439 = scalar_select %p438, %s19, 0
        %s440 = sadd.s32 %s439, %s437
        %s441 = smul.addr %s440, 8
        %s442 = scalar_lea.vmem %s1, %s441
      $region40: #{tpu_custom_call.1} parent=35 // pred_fallthru
        _
    $region36: #{tpu_custom_call.1} parent=5 // pred_fallthru
      _
  $region6: #{tpu_custom_call.1} parent=0 // loop_footer
    %s11 = sadd.s32 1, %s7
  $region7: #{tpu_custom_call.1} parent=0 // loop_footer_branch
    %6 = sbr.rel target = $region3
  $region8: #{tpu_custom_call.1} parent=0 // loop_exit
    _

</llo_original>
